<compile_context>
chip_gen: v7x
topology: tpu7x:2x2x1
jax: 0.10.0
libtpu: 0.0.40
codegen_flags: <defaults>
</compile_context>

<pallas_src>
import jax
import jax.numpy as jnp
from jax.experimental import pallas as pl
from jax.experimental.pallas import tpu as pltpu


# ---------------------------------------------------------------------------
# helpers
# ---------------------------------------------------------------------------

def _pick_tile(n, preferred, quantum):
    """Largest tile <= preferred that divides n and is a multiple of `quantum`.

    Falls back to the full extent n (always a legal block dim).
    TODO(synk): for awkward n (e.g. prime N=197) this falls back to a single
    full-extent tile; padding + key masking would keep tiles MXU-friendly.
    """
    if n <= preferred:
        return n
    for t in range(preferred, 0, -1):
        if n % t == 0 and t % quantum == 0:
            return t
    return n


# ---------------------------------------------------------------------------
# Tiled linear: y = x @ W_T (+ b), W_T pre-transposed to (Cin, Cout)
# ---------------------------------------------------------------------------

def _linear_kernel(x_ref, w_ref, o_ref):
    # x_ref: (tm, Cin), w_ref: (Cin, tc), o_ref: (tm, tc)
    o_ref[...] = jnp.dot(x_ref[...], w_ref[...],
                         preferred_element_type=jnp.float32).astype(o_ref.dtype)


def _linear_bias_kernel(x_ref, w_ref, b_ref, o_ref):
    acc = jnp.dot(x_ref[...], w_ref[...], preferred_element_type=jnp.float32)
    o_ref[...] = (acc + b_ref[...].astype(jnp.float32)).astype(o_ref.dtype)


# Per-buffer weight budget; beyond this we tile output columns instead of
# holding the (double-buffered) weight fully resident in VMEM.
_WEIGHT_RESIDENT_BYTES = 4 * 1024 * 1024


def _linear(x2d, w_t, b=None, *, out_dtype, row_tile=256, col_tile=1024):
    """x2d: (M, Cin); w_t: (Cin, Cout) pre-transposed; b: (Cout,) f32 or None."""
    M, Cin = x2d.shape
    Cout = w_t.shape[1]
    tm = _pick_tile(M, row_tile, 8)            # second-minor: mult of 8 or full
    if Cin * Cout * w_t.dtype.itemsize <= _WEIGHT_RESIDENT_BYTES:
        tc = Cout                              # small weight: fully resident
    else:
        tc = _pick_tile(Cout, col_tile, 128)   # big weight: tile output columns

    # Grid = (col tiles, row tiles), rows innermost -> the weight column slab is
    # stationary while rows stream past it (weight read from HBM once).
    grid = (Cout // tc, M // tm)

    in_specs = [
        pl.BlockSpec((tm, Cin), lambda j, i: (i, 0)),
        pl.BlockSpec((Cin, tc), lambda j, i: (0, j)),
    ]
    args = [x2d, w_t]
    if b is not None:
        in_specs.append(pl.BlockSpec((1, tc), lambda j, i: (0, j)))
        args.append(b.reshape(1, Cout))
        kernel = _linear_bias_kernel
    else:
        kernel = _linear_kernel

    return pl.pallas_call(
        kernel,
        out_shape=jax.ShapeDtypeStruct((M, Cout), out_dtype),
        grid_spec=pltpu.PrefetchScalarGridSpec(
            num_scalar_prefetch=0,
            grid=grid,
            in_specs=in_specs,
            out_specs=pl.BlockSpec((tm, tc), lambda j, i: (i, j)),
        ),
        compiler_params=pltpu.CompilerParams(
            dimension_semantics=("parallel", "parallel")),
    )(*args)


# ---------------------------------------------------------------------------
# Flash attention reading q/k/v straight from the packed (B, N, 3, H, hd) qkv
# projection output; grid = (B, nq, nkv), kv axis last ("arbitrary").
# ---------------------------------------------------------------------------

def _make_flash_attn_kernel(num_heads):
    H = num_heads

    def kernel(q_ref, k_ref, v_ref, o_ref, qh_scr, m_scr, l_scr, acc_scr):
        # q_ref : (1, tq, 1, H, hd)   compute dtype (bf16)
        # k_ref : (1, tkv, 1, H, hd)
        # v_ref : (1, tkv, 1, H, hd)
        # o_ref : (1, tq, H, hd)
        # qh_scr: (H, tq, hd)  compute dtype   head-split q cached per q tile
        # m_scr : (H, tq, 1)   f32             running max
        # l_scr : (H, tq, 1)   f32             running denom
        # acc_scr:(H, tq, hd)  f32             output accumulator
        ki = pl.program_id(2)

        @pl.when(ki == 0)
        def _init():
            m_scr[...] = jnp.full(m_scr.shape, -jnp.inf, dtype=m_scr.dtype)
            l_scr[...] = jnp.zeros(l_scr.shape, l_scr.dtype)
            acc_scr[...] = jnp.zeros(acc_scr.shape, acc_scr.dtype)
            # Head-split q once per q tile (amortized over all kv steps).
            for h in range(H):
                qh_scr[h] = q_ref[0, :, 0, h, :]

        # Static per-head loop: plain 2-D MXU matmuls + in-VMEM strided slices
        # of the packed blocks — no HBM relayout anywhere.
        for h in range(H):
            k_h = k_ref[0, :, 0, h, :]                      # (tkv, hd)
            v_h = v_ref[0, :, 0, h, :]                      # (tkv, hd)
            # q @ k^T, contracting trailing head_dim (no k.T materialized).
            s = jax.lax.dot_general(
                qh_scr[h], k_h,
                dimension_numbers=(((1,), (1,)), ((), ())),
                preferred_element_type=jnp.float32)         # (tq, tkv) f32
            # NOTE: softmax scale was folded into the q projection weight.
            m_prev = m_scr[h]
            m_new = jnp.maximum(m_prev, jnp.max(s, axis=-1, keepdims=True))
            alpha = jnp.exp(m_prev - m_new)
            p = jnp.exp(s - m_new)                          # (tq, tkv)
            l_scr[h] = alpha * l_scr[h] + jnp.sum(p, axis=-1, keepdims=True)
            acc_scr[h] = alpha * acc_scr[h] + jnp.dot(
                p.astype(jnp.bfloat16), v_h.astype(jnp.bfloat16),
                preferred_element_type=jnp.float32)         # bf16 MXU operands
            m_scr[h] = m_new

        @pl.when(ki == pl.num_programs(2) - 1)
        def _finalize():
            for h in range(H):
                inv_l = pl.reciprocal(l_scr[h], approx=True)    # EUP slot
                o_ref[0, :, h, :] = (acc_scr[h] * inv_l).astype(o_ref.dtype)

    return kernel


def _flash_attention(qkv5, *, tile_q=512, tile_kv=256):
    """qkv5: (B, N, 3, H, hd) packed projection -> attention output (B, N, H, hd)."""
    B, N, _, H, hd = qkv5.shape
    tq = _pick_tile(N, tile_q, 8)
    tkv = _pick_tile(N, tile_kv, 8)
    grid = (B, N // tq, N // tkv)

    return pl.pallas_call(
        _make_flash_attn_kernel(H),
        out_shape=jax.ShapeDtypeStruct((B, N, H, hd), qkv5.dtype),
        grid_spec=pltpu.PrefetchScalarGridSpec(
            num_scalar_prefetch=0,
            grid=grid,
            in_specs=[
                pl.BlockSpec((1, tq, 1, H, hd), lambda b, qi, ki: (b, qi, 0, 0, 0)),
                pl.BlockSpec((1, tkv, 1, H, hd), lambda b, qi, ki: (b, ki, 1, 0, 0)),
                pl.BlockSpec((1, tkv, 1, H, hd), lambda b, qi, ki: (b, ki, 2, 0, 0)),
            ],
            out_specs=pl.BlockSpec((1, tq, H, hd), lambda b, qi, ki: (b, qi, 0, 0)),
            scratch_shapes=[
                pltpu.VMEM((H, tq, hd), qkv5.dtype),    # head-split q cache
                pltpu.VMEM((H, tq, 1), jnp.float32),    # running max
                pltpu.VMEM((H, tq, 1), jnp.float32),    # running denom
                pltpu.VMEM((H, tq, hd), jnp.float32),   # output accumulator
            ],
        ),
        compiler_params=pltpu.CompilerParams(
            dimension_semantics=("parallel", "parallel", "arbitrary")),
    )(qkv5, qkv5, qkv5)


# ---------------------------------------------------------------------------
# Full module forward
# ---------------------------------------------------------------------------

def attention_pallas(x, w_qkv, w_proj, b_proj, num_heads=8, qk_scale=None,
                     tile_q=512, tile_kv=256, row_tile=256, col_tile=1024,
                     compute_dtype=jnp.bfloat16):
    """x: (B, N, C); w_qkv: (3C, C); w_proj: (C, C); b_proj: (C,)."""
    B, N, C = x.shape
    assert C % num_heads == 0, "C must be divisible by num_heads"
    H = num_heads
    hd = C // H
    scale = qk_scale if qk_scale is not None else hd ** (-0.5)
    out_dtype = x.dtype

    # Pre-transpose weights once; fold the softmax scale into the q columns so
    # the kernels never scale the (N, N) attention matrix; cast to the bf16
    # compute dtype (MXU-native on v5e/v6e/v7x).  Accumulation stays f32.
    w_qkv_t = jnp.swapaxes(w_qkv, 0, 1).astype(jnp.float32)         # (C, 3C)
    col_scale = jnp.concatenate([
        jnp.full((C,), scale, dtype=jnp.float32),
        jnp.ones((2 * C,), dtype=jnp.float32),
    ])
    w_qkv_t = (w_qkv_t * col_scale[None, :]).astype(compute_dtype)
    w_proj_t = jnp.swapaxes(w_proj, 0, 1).astype(compute_dtype)     # (C, C)

    # 1) fused qkv projection on the flattened (B*N, C) view.
    qkv = _linear(x.astype(compute_dtype).reshape(B * N, C), w_qkv_t,
                  out_dtype=compute_dtype, row_tile=row_tile, col_tile=col_tile)

    # 2) flash attention reads q/k/v straight from the packed projection output
    #    (free reshape: heads live in the trailing dim) and writes (B, N, H, hd).
    o = _flash_attention(qkv.reshape(B, N, 3, H, hd),
                         tile_q=tile_q, tile_kv=tile_kv)

    # 3) output projection on the free (B*N, C) view of the attention output.
    y = _linear(o.reshape(B * N, C), w_proj_t, b_proj.astype(jnp.float32),
                out_dtype=out_dtype, row_tile=row_tile, col_tile=col_tile)
    return y.reshape(B, N, C)
    # TODO(synk): attn_drop / proj_drop are identity (p=0.0 / eval); not implemented.


def attention_ref(x, w_qkv, w_proj, b_proj, num_heads=8, qk_scale=None):
    """Pure-JAX f32 reference matching the PyTorch forward."""
    B, N, C = x.shape
    head_dim = C // num_heads
    scale = qk_scale if qk_scale is not None else head_dim ** (-0.5)
    qkv = x @ w_qkv.T                                               # (B, N, 3C)
    qkv = qkv.reshape(B, N, 3, num_heads, head_dim).transpose(2, 0, 3, 1, 4)
    q, k, v = qkv[0], qkv[1], qkv[2]                                # (B, H, N, hd)
    attn = (q @ jnp.swapaxes(k, -2, -1)) * scale
    attn = jax.nn.softmax(attn, axis=-1)
    out = (attn @ v).transpose(0, 2, 1, 3).reshape(B, N, C)
    return out @ w_proj.T + b_proj


def _run_case(B, N, C, num_heads, **kw):
    key = jax.random.PRNGKey(0)
    kx, kq, kp, kb = jax.random.split(key, 4)
    x = jax.random.normal(kx, (B, N, C), dtype=jnp.float32)
    # deterministic parameter init (qkv has no bias: qkv_bias=False default)
    w_qkv = jax.random.normal(kq, (3 * C, C), dtype=jnp.float32) * 0.05
    w_proj = jax.random.normal(kp, (C, C), dtype=jnp.float32) * 0.05
    b_proj = jax.random.normal(kb, (C,), dtype=jnp.float32) * 0.05

    out = attention_pallas(x, w_qkv, w_proj, b_proj, num_heads=num_heads, **kw)
    out = jax.block_until_ready(out)
    ref = attention_ref(x, w_qkv, w_proj, b_proj, num_heads=num_heads)
    assert out.shape == (B, N, C)
    err = jnp.max(jnp.abs(out - ref))
    # bf16 MXU operands + approx reciprocal in the softmax denominator.
    assert jnp.allclose(out, ref, atol=2e-2, rtol=2e-2), f"max abs err {err}"


if __name__ == "__main__":
    # Tiny shape consistent with the module defaults (dim=32, 8 heads).
    _run_case(B=2, N=8, C=32, num_heads=8)
    # Longer sequence with explicit small tiles: exercises multi-tile grids,
    # the online-softmax accumulation across kv tiles (nkv > 1), q-tile scratch
    # re-init (nq > 1) and multi-row-tile linears.
    _run_case(B=2, N=256, C=32, num_heads=8, tile_q=128, tile_kv=128)
    print("KERNEL_OK")
</pallas_src>

<mosaic_0001>
module attributes {stable_mosaic.version = 11 : i64} {
  func.func @_linear_kernel(%arg0: i32, %arg1: i32, %arg2: memref<16x32xbf16, #tpu.memory_space<vmem>>, %arg3: memref<32x96xbf16, #tpu.memory_space<vmem>>, %arg4: memref<16x96xbf16, #tpu.memory_space<vmem>>) attributes {dimension_semantics = [#tpu.dimension_semantics<parallel>, #tpu.dimension_semantics<parallel>], iteration_bounds = array<i64: 1, 1>, scalar_prefetch = 0 : i64, scratch_operands = 0 : i64, tpu.core_type = #tpu.core_type<tc>, window_params = [{transform_indices = @transform_0, window_bounds = array<i64: 16, 32>}, {transform_indices = @transform_1, window_bounds = array<i64: 32, 96>}, {transform_indices = @transform_2, window_bounds = array<i64: 16, 96>}]} {
    %c0 = arith.constant 0 : index
    %c0_0 = arith.constant 0 : index
    %0 = vector.load %arg2[%c0, %c0_0] : memref<16x32xbf16, #tpu.memory_space<vmem>>, vector<16x32xbf16>
    %c0_1 = arith.constant 0 : index
    %c0_2 = arith.constant 0 : index
    %1 = vector.load %arg3[%c0_1, %c0_2] : memref<32x96xbf16, #tpu.memory_space<vmem>>, vector<32x96xbf16>
    %cst = arith.constant dense<0.000000e+00> : vector<16x96xf32>
    %2 = tpu.matmul %0, %1, %cst {dimension_numbers = #tpu.dot_dimension_numbers<[1], [0], [0], [1], [0, 0, 1, 1], [], []>} : vector<16x32xbf16>, vector<32x96xbf16>, vector<16x96xf32> -> vector<16x96xf32>
    %3 = arith.truncf %2 : vector<16x96xf32> to vector<16x96xbf16>
    %c0_3 = arith.constant 0 : index
    %c0_4 = arith.constant 0 : index
    %4 = vector.load %arg4[%c0_3, %c0_4] : memref<16x96xbf16, #tpu.memory_space<vmem>>, vector<16x96xbf16>
    tpu.vector_store %arg4[%c0_3, %c0_4], %3 {strides = array<i32>} : memref<16x96xbf16, #tpu.memory_space<vmem>>, vector<16x96xbf16>,
    return
  }
  func.func @transform_0(%arg0: i32, %arg1: i32) -> (i32, i32) {
    %c0_i32 = arith.constant 0 : i32
    %c0_i32_0 = arith.constant 0 : i32
    return %arg1, %c0_i32 : i32, i32
  }
  func.func @transform_1(%arg0: i32, %arg1: i32) -> (i32, i32) {
    %c0_i32 = arith.constant 0 : i32
    %c0_i32_0 = arith.constant 0 : i32
    return %c0_i32, %arg0 : i32, i32
  }
  func.func @transform_2(%arg0: i32, %arg1: i32) -> (i32, i32) {
    %c0_i32 = arith.constant 0 : i32
    return %arg1, %arg0 : i32, i32
  }
}

</mosaic_0001>

<llo_original>
// kernel: tpu_custom_call.1
$region0: #{tpu_custom_call.1}
  #allocation0 [shape = 'u32[]', space=smem, size = 0x4, offset = 0x4, fixed_abs, tag = 'smem constant byte address 0x4 - core index']
  #allocation1 [shape = 'u32[144,128]{1,0:T(1,128)}', space=vmem, size = 0x12000, scoped, tag = 'internal scratch']
  %s0 = inlined_call_operand.hbm [shape: bf16[16,32], index: 0, kind: input, shape index: {}]
  %s1 = inlined_call_operand.hbm [shape: bf16[32,96], index: 1, kind: input, shape index: {}]
  %s2 = inlined_call_operand.hbm [shape: bf16[16,96], index: 2, kind: output, shape index: {}]
  %s3 = sld [smem:[#allocation0]]
  $region26: #{tpu_custom_call.1} parent=0
    _
  %s5 = ssub.s32 1, %s3
  %s6 = scalar_select 0, %s5, %s3
  $region1: #{tpu_custom_call.1} parent=0
    #allocation2 [shape = 'u8[4096]{0}', space=vmem, size = 0x1000, scoped, tag = 'input window, operand 0, single buffered']
    #allocation3 [shape = 's32[1]{0}', space=sflag, size = 0x4, scoped, tag = 'scoped memory for tpu_custom_call.1']
    #allocation4 [shape = 's32[1]{0}', space=sflag, size = 0x4, scoped, tag = 'scoped memory for tpu_custom_call.1']
    #allocation5 [shape = 'u8[8192]{0}', space=vmem, size = 0x2000, scoped, tag = 'input window, operand 1, single buffered']
    #allocation6 [shape = 's32[1]{0}', space=sflag, size = 0x4, scoped, tag = 'scoped memory for tpu_custom_call.1']
    #allocation7 [shape = 'u8[4096]{0}', space=vmem, size = 0x1000, scoped, tag = 'output window, operand 0, single buffered']
    %7 = vsyncpa [#allocation3], 0
    %8 = vsyncpa [#allocation6], 0
    %9 = vsyncpa [#allocation4], 0
    // Predicated region
    $region2: #{tpu_custom_call.1} parent=1 // pred_check
      _
    $region3: #{tpu_custom_call.1} parent=1 // pred_check_branch
      %11 = sbr.rel (0) target = $region5
    $region4: #{tpu_custom_call.1} parent=1 // pred_region
      %s13 = ssub.s32 128, 128
      %14 = vsyncadd [#allocation3], %s13
      %s15 = sshll.u32 [#allocation2], 4
      %s16 = int_to_ptr.vmem [resolvable:$true] %s15
      %21 = dma.hbm_to_vmem [thread:$0]  %s0, 128, %s16, [#allocation3], 64, 64, 4
    $region5: #{tpu_custom_call.1} parent=1 // pred_fallthru
      _
    // Predicated region
    $region6: #{tpu_custom_call.1} parent=1 // pred_check
      _
    $region7: #{tpu_custom_call.1} parent=1 // pred_check_branch
      %23 = sbr.rel (0) target = $region9
    $region8: #{tpu_custom_call.1} parent=1 // pred_region
      %s25 = ssub.s32 256, 256
      %26 = vsyncadd [#allocation6], %s25
      %s27 = sshll.u32 [#allocation5], 4
      %s28 = int_to_ptr.vmem [resolvable:$true] %s27
      %33 = dma.hbm_to_vmem [thread:$0]  %s1, 256, %s28, [#allocation6], 64, 64, 4
    $region9: #{tpu_custom_call.1} parent=1 // pred_fallthru
      _
    // Predicated region
    $region10: #{tpu_custom_call.1} parent=1 // pred_check
      _
    $region11: #{tpu_custom_call.1} parent=1 // pred_check_branch
      %35 = sbr.rel (0) target = $region13
    $region12: #{tpu_custom_call.1} parent=1 // pred_region
      %36 = dma.done [#allocation3], 128
    $region13: #{tpu_custom_call.1} parent=1 // pred_fallthru
      _
    // Predicated region
    $region14: #{tpu_custom_call.1} parent=1 // pred_check
      _
    $region15: #{tpu_custom_call.1} parent=1 // pred_check_branch
      %38 = sbr.rel (0) target = $region17
    $region16: #{tpu_custom_call.1} parent=1 // pred_region
      %39 = dma.done [#allocation6], 256
    $region17: #{tpu_custom_call.1} parent=1 // pred_fallthru
      _
    %v41 = vld [vmem:[#allocation2] sm:$0xf]
    %v42 = vld [vmem:[#allocation2 + $0x4] sm:$0xf]
    %v43 = vld [vmem:[#allocation5] sm:$0xf]
    %v44 = vld [vmem:[#allocation5 + $0x4] sm:$0xf]
    %v45 = vld [vmem:[#allocation5 + $0x8] sm:$0xf]
    %v46 = vld [vmem:[#allocation5 + $0xc] sm:$0xf]
    %v49 = vunpack.c.l.b16 %v41
    %v50 = vunpack.c.l.b16 %v42
    %v51 = vpack.c.b16 %v50, %v49
    %v56 = vunpack.c.l.b16 %v43
    %v57 = vunpack.c.l.b16 %v44
    %v58 = vunpack.c.l.b16 %v45
    %v59 = vunpack.c.l.b16 %v46
    %v60 = vpack.c.b16 %v57, %v56
    %v61 = vpack.c.b16 %v59, %v58
    %vm64 = vcmask 261120
    %v66 = vsel %vm64, %v51, 0
    %68 = vmatprep.subr.bf16.mxu0 0
    %69 = vmatpush1.bf16.msra.mxu0 %v60
    %70 = vmatprep.subr.bf16.mxu0 0
    %71 = vmatpush1.bf16.msra.mxu0 %v61
    %72 = vmatprep.subr.bf16.mxu0 0
    %73 = vmatpush1.bf16.msra.mxu0 0
    %74 = vmatprep.subr.bf16.mxu0 0
    %75 = vmatpush1.bf16.msra.mxu0 0
    %76 = vmatprep.subr.bf16.mxu0 0
    %77 = vmatpush1.bf16.msra.mxu0 0
    %78 = vmatprep.subr.bf16.mxu0 0
    %79 = vmatpush1.bf16.msra.mxu0 0
    %80 = vmatprep.subr.bf16.mxu0 0
    %81 = vmatpush1.bf16.msra.mxu0 0
    %82 = vmatprep.subr.bf16.mxu0 0
    %83 = vmatpush1.bf16.msra.mxu0 0
    %84 = vmatprep.subr.bf16.mxu0 0
    %85 = vmatpush1.bf16.msra.mxu0 0
    %86 = vmatprep.subr.bf16.mxu0 0
    %87 = vmatpush1.bf16.msra.mxu0 0
    %88 = vmatprep.subr.bf16.mxu0 0
    %89 = vmatpush1.bf16.msra.mxu0 0
    %90 = vmatprep.subr.bf16.mxu0 0
    %91 = vmatpush1.bf16.msra.mxu0 0
    %92 = vmatprep.subr.bf16.mxu0 0
    %93 = vmatpush1.bf16.msra.mxu0 0
    %94 = vmatprep.subr.bf16.mxu0 0
    %95 = vmatpush1.bf16.msra.mxu0 0
    %96 = vmatprep.subr.bf16.mxu0 0
    %97 = vmatpush1.bf16.msra.mxu0 0
    %98 = vmatprep.subr.bf16.mxu0 0
    %99 = vmatpush1.bf16.msra.mxu0 0
    %100 = vmatprep.mubr.bf16.mxu0 0
    %101 = vmatmul.mubr.bf16.gmra.mrb[0].mxu0 %v66
    %v102 = vpop.f32.mrb[0].mxu0
    %v103 = vadd.f32 0.0, %v102
    %v104 = vpop.f32.mrb[0].mxu0
    %v105 = vpop.f32.mrb[0].mxu0
    %v106 = vadd.f32 0.0, %v105
    %v107 = vpop.f32.mrb[0].mxu0
    %108 = vdwg.mxu0
    %v109 = vpack.c.bf16 %v106, %v103
    %v111 = vunpack.c.l.b16 %v109
    %v112 = vunpack.c.h.b16 %v109
    %v113 = vpack.c.b16 %v111, %v111
    %v114 = vpack.c.b16 %v112, %v112
    %vm117 = vcmask 781312
    %118 = vst.msk [vmem:[#allocation7] sm:$0xf] %vm117, %v113
    %119 = vst.msk [vmem:[#allocation7 + $0x4] sm:$0xf] %vm117, %v114
    // Predicated region
    $region18: #{tpu_custom_call.1} parent=1 // pred_check
      _
    $region19: #{tpu_custom_call.1} parent=1 // pred_check_branch
      %121 = sbr.rel (0) target = $region21
    $region20: #{tpu_custom_call.1} parent=1 // pred_region
      %s123 = ssub.s32 128, 128
      %124 = vsyncadd [#allocation4], %s123
      %s125 = sshll.u32 [#allocation7], 4
      %s126 = int_to_ptr.vmem [resolvable:$true] %s125
      %131 = dma.vmem_to_hbm [thread:$0]  %s126, 128, %s2, [#allocation4], 64, 64, 4
    $region21: #{tpu_custom_call.1} parent=1 // pred_fallthru
      _
    // Predicated region
    $region22: #{tpu_custom_call.1} parent=1 // pred_check
      _
    $region23: #{tpu_custom_call.1} parent=1 // pred_check_branch
      %133 = sbr.rel (0) target = $region25
    $region24: #{tpu_custom_call.1} parent=1 // pred_region
      %134 = dma.done [#allocation4], 128
    $region25: #{tpu_custom_call.1} parent=1 // pred_fallthru
      _
    %135 = vsyncpa [#allocation3], 1
    %136 = vsyncpa [#allocation6], 1
    %137 = vsyncpa [#allocation4], 1

</llo_original>
